<compile_context>
chip_gen: v6e
topology: v6e:2x2x1
jax: 0.10.0
libtpu: 0.0.40
codegen_flags: <defaults>
</compile_context>

<pallas_src>
import functools

import jax
import jax.numpy as jnp
from jax.experimental import pallas as pl
from jax.experimental.pallas import tpu as pltpu


def gru_kernel(x_ref, h_ref, w_ref, wc_rh_ref, b_ref, o_ref, *,
               dim_latent, gate_pad):
    D = dim_latent
    G = gate_pad

    x = x_ref[...]                                   # f32 (B, dim_in)
    h = h_ref[...]                                   # f32 (B, D)

    # Single fused projection of cat([x, h]) against [Wz | Wr | Wc_x]:
    # bf16 MXU operands, f32 accumulation, one packed (1, 3G) bias add.
    xh = jnp.concatenate([x, h], axis=1).astype(jnp.bfloat16)   # (B, K)
    g = (jnp.dot(xh, w_ref[...], preferred_element_type=jnp.float32)
         + b_ref[...])                               # f32 (B, 3G)

    # Gate slabs are 128-lane aligned -> slices start at lane 0 of their vreg.
    zt = jax.nn.sigmoid(g[:, 0:D])                   # update gate
    rt = jax.nn.sigmoid(g[:, G:G + D])               # forget/reset gate
    cx = g[:, 2 * G:2 * G + D]                       # x-side candidate + bias

    rh = (rt * h).astype(jnp.bfloat16)
    cand = jnp.tanh(
        jnp.dot(rh, wc_rh_ref[...], preferred_element_type=jnp.float32) + cx)

    # (1 - zt) * h + zt * cand  ==  h + zt * (cand - h)
    o_ref[...] = h + zt * (cand - h)


def gru_forward(x, h, params):
    """One GRU step in a single pallas_call (whole batch in one block).

    NOTE: the output aliases (donates) h's buffer; do not reuse `h` after
    this call.
    """
    B, dim_in = x.shape
    _, dim_latent = h.shape
    w_packed, wc_rh, b_packed = params
    K, threeG = w_packed.shape
    G = threeG // 3

    batch_map = lambda i: (i, 0)
    full_map = lambda i: (0, 0)

    kernel = functools.partial(gru_kernel, dim_latent=dim_latent, gate_pad=G)

    out = pl.pallas_call(
        kernel,
        out_shape=jax.ShapeDtypeStruct((B, dim_latent), jnp.float32),
        grid=(1,),                     # B=8 is a single block; splitting is pure overhead
        in_specs=[
            pl.BlockSpec((B, dim_in), batch_map),              # x      (f32)
            pl.BlockSpec((B, dim_latent), batch_map),          # h      (f32)
            pl.BlockSpec((K, threeG), full_map),               # fused gate weights (bf16)
            pl.BlockSpec((dim_latent, dim_latent), full_map),  # Wc_rh  (bf16)
            pl.BlockSpec((1, threeG), full_map),               # packed bias (f32)
        ],
        out_specs=pl.BlockSpec((B, dim_latent), batch_map),
        # Output (f32, (B, dim_latent)) reuses h's buffer -> in-place h update.
        input_output_aliases={1: 0},
        compiler_params=pltpu.CompilerParams(
            dimension_semantics=("parallel",)),
    )(x, h, w_packed, wc_rh, b_packed)
    return out


def init_params(key, dim_in, dim_latent, gate_pad=None):
    """Init matching nn.Linear(dim_latent + dim_in, dim_latent):
    weight (dim_latent, fan_in), bias (dim_latent,),
    U(-1/sqrt(fan_in), 1/sqrt(fan_in)). Returns (packed, raw)."""
    fan_in = dim_latent + dim_in
    bound = 1.0 / (fan_in ** 0.5)
    keys = jax.random.split(key, 6)

    def lin(kw, kb):
        w = jax.random.uniform(kw, (dim_latent, fan_in), jnp.float32, -bound, bound)
        b = jax.random.uniform(kb, (dim_latent,), jnp.float32, -bound, bound)
        return w, b

    w_forget, b_forget = lin(keys[0], keys[1])      # "forget" (rt)
    w_update, b_update = lin(keys[2], keys[3])      # "update" (zt)
    w_cand, b_cand = lin(keys[4], keys[5])          # candidate

    D = dim_latent
    G = gate_pad if gate_pad is not None else ((D + 127) // 128) * 128
    K = dim_in + D

    # Transposed weights, (in_features, out_features).
    wz = w_update.T          # rows ordered [x (dim_in); h (D)]  (cat([x, h]))
    wr = w_forget.T          # rows ordered [x; h]
    wc = w_cand.T            # rows ordered [rt*h (D); x (dim_in)] (cat([rt*h, x]))
    wc_rh = wc[:D]           # (D, D)      separate matmul (data dep on rt*h)
    wc_x = wc[D:]            # (dim_in, D)

    # Fused gate weight: columns [z | r | c], each padded to G lanes; rows
    # ordered [x; h] to match the in-kernel cat([x, h]).  The candidate
    # block's h-rows stay zero (its h path is the rt*h matmul).
    w_packed = jnp.zeros((K, 3 * G), jnp.float32)
    w_packed = w_packed.at[:, 0:D].set(wz)
    w_packed = w_packed.at[:, G:G + D].set(wr)
    w_packed = w_packed.at[:dim_in, 2 * G:2 * G + D].set(wc_x)

    b_packed = jnp.zeros((1, 3 * G), jnp.float32)
    b_packed = b_packed.at[0, 0:D].set(b_update)
    b_packed = b_packed.at[0, G:G + D].set(b_forget)
    b_packed = b_packed.at[0, 2 * G:2 * G + D].set(b_cand)

    packed = (w_packed.astype(jnp.bfloat16), wc_rh.astype(jnp.bfloat16), b_packed)
    raw = (w_forget, b_forget, w_update, b_update, w_cand, b_cand)
    return packed, raw


def gru_reference(x, h, raw):
    """Pure-JAX f32 reference mirroring the PyTorch code exactly."""
    w_forget, b_forget, w_update, b_update, w_cand, b_cand = raw
    xh = jnp.concatenate([x, h], axis=1)
    zt = jax.nn.sigmoid(xh @ w_update.T + b_update)
    rt = jax.nn.sigmoid(xh @ w_forget.T + b_forget)
    rhx = jnp.concatenate([rt * h, x], axis=1)
    return (1.0 - zt) * h + zt * jnp.tanh(rhx @ w_cand.T + b_cand)


if __name__ == "__main__":
    B, dim_in, dim_latent = 8, 16, 32

    key = jax.random.PRNGKey(0)
    k_x, k_h, k_p = jax.random.split(key, 3)
    x = jax.random.normal(k_x, (B, dim_in), jnp.float32)
    h = jax.random.normal(k_h, (B, dim_latent), jnp.float32)

    params, raw = init_params(k_p, dim_in, dim_latent)

    # Compute the f32 reference before the kernel (the kernel output aliases
    # and clobbers h's buffer).
    ref = jax.block_until_ready(gru_reference(x, h, raw))

    out = jax.block_until_ready(gru_forward(x, h, params))

    assert out.shape == (B, dim_latent)
    # bf16 MXU operands with f32 accumulation vs. a pure-f32 reference:
    # tolerance accounts for the bf16 quantization of x/h/weights.
    assert jnp.allclose(out, ref, atol=5e-2, rtol=5e-2), "mismatch vs reference"

    print("KERNEL_OK")
</pallas_src>

<mosaic_0001>
module attributes {stable_mosaic.version = 11 : i64} {
  func.func @gru_kernel(%arg0: i32, %arg1: memref<8x16xf32, #tpu.memory_space<vmem>>, %arg2: memref<8x32xf32, #tpu.memory_space<vmem>>, %arg3: memref<48x384xbf16, #tpu.memory_space<vmem>>, %arg4: memref<32x32xbf16, #tpu.memory_space<vmem>>, %arg5: memref<1x384xf32, #tpu.memory_space<vmem>>, %arg6: memref<8x32xf32, #tpu.memory_space<vmem>>) attributes {dimension_semantics = [#tpu.dimension_semantics<parallel>], iteration_bounds = array<i64: 1>, scalar_prefetch = 0 : i64, scratch_operands = 0 : i64, tpu.core_type = #tpu.core_type<tc>, window_params = [{transform_indices = @transform_0, window_bounds = array<i64: 8, 16>}, {transform_indices = @transform_1, window_bounds = array<i64: 8, 32>}, {pipeline_mode = #tpu.pipeline_mode<synchronous>, transform_indices = @transform_2, window_bounds = array<i64: 48, 384>}, {pipeline_mode = #tpu.pipeline_mode<synchronous>, transform_indices = @transform_3, window_bounds = array<i64: 32, 32>}, {pipeline_mode = #tpu.pipeline_mode<synchronous>, transform_indices = @transform_4, window_bounds = array<i64: 1, 384>}, {transform_indices = @transform_5, window_bounds = array<i64: 8, 32>}]} {
    %c0 = arith.constant 0 : index
    %c0_0 = arith.constant 0 : index
    %0 = vector.load %arg1[%c0, %c0_0] : memref<8x16xf32, #tpu.memory_space<vmem>>, vector<8x16xf32>
    %c0_1 = arith.constant 0 : index
    %c0_2 = arith.constant 0 : index
    %1 = vector.load %arg2[%c0_1, %c0_2] : memref<8x32xf32, #tpu.memory_space<vmem>>, vector<8x32xf32>
    %2 = tpu.concatenate %0, %1 in 1 : vector<8x16xf32>, vector<8x32xf32> -> vector<8x48xf32>
    %3 = arith.truncf %2 : vector<8x48xf32> to vector<8x48xbf16>
    %c0_3 = arith.constant 0 : index
    %c0_4 = arith.constant 0 : index
    %4 = vector.load %arg3[%c0_3, %c0_4] : memref<48x384xbf16, #tpu.memory_space<vmem>>, vector<48x384xbf16>
    %cst = arith.constant dense<0.000000e+00> : vector<8x384xf32>
    %5 = tpu.matmul %3, %4, %cst {dimension_numbers = #tpu.dot_dimension_numbers<[1], [0], [0], [1], [0, 0, 1, 1], [], []>} : vector<8x48xbf16>, vector<48x384xbf16>, vector<8x384xf32> -> vector<8x384xf32>
    %c0_5 = arith.constant 0 : index
    %c0_6 = arith.constant 0 : index
    %6 = vector.load %arg5[%c0_5, %c0_6] : memref<1x384xf32, #tpu.memory_space<vmem>>, vector<1x384xf32>
    %7 = vector.broadcast %6 : vector<1x384xf32> to vector<8x384xf32>
    %8 = arith.addf %5, %7 : vector<8x384xf32>
    %9 = vector.extract_strided_slice %8 {offsets = [0, 0], sizes = [8, 32], strides = [1, 1]} : vector<8x384xf32> to vector<8x32xf32>
    %10 = arith.negf %9 : vector<8x32xf32>
    %11 = math.exp %10 : vector<8x32xf32>
    %cst_7 = arith.constant 1.000000e+00 : f32
    %12 = vector.broadcast %cst_7 : f32 to vector<8x32xf32>
    %13 = arith.addf %12, %11 : vector<8x32xf32>
    %14 = arith.divf %12, %13 : vector<8x32xf32>
    %15 = vector.extract_strided_slice %8 {offsets = [0, 128], sizes = [8, 32], strides = [1, 1]} : vector<8x384xf32> to vector<8x32xf32>
    %16 = arith.negf %15 : vector<8x32xf32>
    %17 = math.exp %16 : vector<8x32xf32>
    %cst_8 = arith.constant 1.000000e+00 : f32
    %18 = vector.broadcast %cst_8 : f32 to vector<8x32xf32>
    %19 = arith.addf %18, %17 : vector<8x32xf32>
    %20 = arith.divf %18, %19 : vector<8x32xf32>
    %21 = vector.extract_strided_slice %8 {offsets = [0, 256], sizes = [8, 32], strides = [1, 1]} : vector<8x384xf32> to vector<8x32xf32>
    %22 = arith.mulf %20, %1 : vector<8x32xf32>
    %23 = arith.truncf %22 : vector<8x32xf32> to vector<8x32xbf16>
    %c0_9 = arith.constant 0 : index
    %c0_10 = arith.constant 0 : index
    %24 = vector.load %arg4[%c0_9, %c0_10] : memref<32x32xbf16, #tpu.memory_space<vmem>>, vector<32x32xbf16>
    %cst_11 = arith.constant dense<0.000000e+00> : vector<8x32xf32>
    %25 = tpu.matmul %23, %24, %cst_11 {dimension_numbers = #tpu.dot_dimension_numbers<[1], [0], [0], [1], [0, 0, 1, 1], [], []>} : vector<8x32xbf16>, vector<32x32xbf16>, vector<8x32xf32> -> vector<8x32xf32>
    %26 = arith.addf %25, %21 : vector<8x32xf32>
    %27 = math.tanh %26 : vector<8x32xf32>
    %28 = arith.subf %27, %1 : vector<8x32xf32>
    %29 = arith.mulf %14, %28 : vector<8x32xf32>
    %30 = arith.addf %1, %29 : vector<8x32xf32>
    %c0_12 = arith.constant 0 : index
    %c0_13 = arith.constant 0 : index
    %31 = vector.load %arg6[%c0_12, %c0_13] : memref<8x32xf32, #tpu.memory_space<vmem>>, vector<8x32xf32>
    tpu.vector_store %arg6[%c0_12, %c0_13], %30 {strides = array<i32>} : memref<8x32xf32, #tpu.memory_space<vmem>>, vector<8x32xf32>,
    return
  }
  func.func @transform_0(%arg0: i32) -> (i32, i32) {
    %c0_i32 = arith.constant 0 : i32
    %c0_i32_0 = arith.constant 0 : i32
    return %arg0, %c0_i32 : i32, i32
  }
  func.func @transform_1(%arg0: i32) -> (i32, i32) {
    %c0_i32 = arith.constant 0 : i32
    %c0_i32_0 = arith.constant 0 : i32
    return %arg0, %c0_i32 : i32, i32
  }
  func.func @transform_2(%arg0: i32) -> (i32, i32) {
    %c0_i32 = arith.constant 0 : i32
    %c0_i32_0 = arith.constant 0 : i32
    %c0_i32_1 = arith.constant 0 : i32
    return %c0_i32, %c0_i32_0 : i32, i32
  }
  func.func @transform_3(%arg0: i32) -> (i32, i32) {
    %c0_i32 = arith.constant 0 : i32
    %c0_i32_0 = arith.constant 0 : i32
    %c0_i32_1 = arith.constant 0 : i32
    return %c0_i32, %c0_i32_0 : i32, i32
  }
  func.func @transform_4(%arg0: i32) -> (i32, i32) {
    %c0_i32 = arith.constant 0 : i32
    %c0_i32_0 = arith.constant 0 : i32
    %c0_i32_1 = arith.constant 0 : i32
    return %c0_i32, %c0_i32_0 : i32, i32
  }
  func.func @transform_5(%arg0: i32) -> (i32, i32) {
    %c0_i32 = arith.constant 0 : i32
    %c0_i32_0 = arith.constant 0 : i32
    return %arg0, %c0_i32 : i32, i32
  }
}

</mosaic_0001>

<llo_original>
// kernel: tpu_custom_call.1
$region0: #{tpu_custom_call.1}
  #allocation0 [shape = 'u32[]', space=smem, size = 0x4, offset = 0x4, fixed_abs, tag = 'smem constant byte address 0x4 - core index']
  #allocation1 [shape = 'u32[144,128]{1,0:T(1,128)}', space=vmem, size = 0x12000, scoped, tag = 'internal scratch']
  %s0 = inlined_call_operand.hbm [shape: f32[8,16], index: 0, kind: input, shape index: {}]
  %s1 = inlined_call_operand.hbm [shape: f32[8,32], index: 1, kind: input, shape index: {}, may-alias: {1,5}]
  %s2 = inlined_call_operand.hbm [shape: bf16[48,384], index: 2, kind: input, shape index: {}]
  %s3 = inlined_call_operand.vmem [shape: bf16[32,32], index: 3, kind: input, shape index: {}]
  %s4 = inlined_call_operand.hbm [shape: f32[1,384], index: 4, kind: input, shape index: {}]
  %s5 = inlined_call_operand.hbm [shape: f32[8,32], index: 5, kind: output, shape index: {}, may-alias: {1,5}]
  %s6 = sld [smem:[#allocation0]]
  $region46: #{tpu_custom_call.1} parent=0
    _
  %s8 = ssub.s32 1, %s6
  %s9 = scalar_select 0, %s8, %s6
  $region1: #{tpu_custom_call.1} parent=0
    #allocation2 [shape = 'u8[4096]{0}', space=vmem, size = 0x1000, scoped, tag = 'input window, operand 0, single buffered']
    #allocation3 [shape = 's32[1]{0}', space=sflag, size = 0x4, scoped, tag = 'scoped memory for tpu_custom_call.1']
    #allocation4 [shape = 's32[1]{0}', space=sflag, size = 0x4, scoped, tag = 'scoped memory for tpu_custom_call.1']
    #allocation5 [shape = 'u8[4096]{0}', space=vmem, size = 0x1000, scoped, tag = 'input window, operand 1, single buffered']
    #allocation6 [shape = 's32[1]{0}', space=sflag, size = 0x4, scoped, tag = 'scoped memory for tpu_custom_call.1']
    #allocation7 [shape = 'u8[36864]{0}', space=vmem, size = 0x9000, scoped, tag = 'input window, operand 2, single buffered']
    #allocation8 [shape = 'u8[1536]{0}', space=vmem, size = 0x800, scoped, tag = 'input window, operand 4, single buffered']
    #allocation9 [shape = 's32[1]{0}', space=sflag, size = 0x4, scoped, tag = 'scoped memory for tpu_custom_call.1']
    #allocation10 [shape = 'u8[4096]{0}', space=vmem, size = 0x1000, scoped, tag = 'output window, operand 0, single buffered']
    %10 = vsyncpa [#allocation3], 0
    %11 = vsyncpa [#allocation6], 0
    %12 = vsyncpa [#allocation9], 0
    %13 = vsyncpa [#allocation4], 0
    // Predicated region
    $region2: #{tpu_custom_call.1} parent=1 // pred_check
      _
    $region3: #{tpu_custom_call.1} parent=1 // pred_check_branch
      %15 = sbr.rel (0) target = $region5
    $region4: #{tpu_custom_call.1} parent=1 // pred_region
      %s17 = ssub.s32 128, 128
      %18 = vsyncadd [#allocation3], %s17
      %s20 = sshll.u32 [#allocation2], 4
      %s21 = int_to_ptr.vmem [resolvable:$true] %s20
      %23 = dma.hbm_to_vmem [thread:$0]  %s0, 128, %s21, [#allocation3]
    $region5: #{tpu_custom_call.1} parent=1 // pred_fallthru
      _
    // Predicated region
    $region6: #{tpu_custom_call.1} parent=1 // pred_check
      _
    $region7: #{tpu_custom_call.1} parent=1 // pred_check_branch
      %25 = sbr.rel (0) target = $region9
    $region8: #{tpu_custom_call.1} parent=1 // pred_region
      %s27 = ssub.s32 128, 128
      %28 = vsyncadd [#allocation6], %s27
      %s30 = sshll.u32 [#allocation5], 4
      %s31 = int_to_ptr.vmem [resolvable:$true] %s30
      %33 = dma.hbm_to_vmem [thread:$0]  %s1, 128, %s31, [#allocation6]
    $region9: #{tpu_custom_call.1} parent=1 // pred_fallthru
      _
    // Predicated region
    $region10: #{tpu_custom_call.1} parent=1 // pred_check
      _
    $region11: #{tpu_custom_call.1} parent=1 // pred_check_branch
      %35 = sbr.rel (0) target = $region13
    $region12: #{tpu_custom_call.1} parent=1 // pred_region
      %s37 = ssub.s32 1152, 1152
      %38 = vsyncadd [#allocation6], %s37
      %s39 = sshll.u32 [#allocation7], 4
      %s40 = int_to_ptr.vmem [resolvable:$true] %s39
      %45 = dma.hbm_to_vmem [thread:$0]  %s2, 1152, %s40, [#allocation6], 192, 192, 12
    $region13: #{tpu_custom_call.1} parent=1 // pred_fallthru
      _
    // Predicated region
    $region14: #{tpu_custom_call.1} parent=1 // pred_check
      _
    $region15: #{tpu_custom_call.1} parent=1 // pred_check_branch
      %47 = sbr.rel (0) target = $region17
    $region16: #{tpu_custom_call.1} parent=1 // pred_region
      _
    $region17: #{tpu_custom_call.1} parent=1 // pred_fallthru
      _
    // Predicated region
    $region18: #{tpu_custom_call.1} parent=1 // pred_check
      _
    $region19: #{tpu_custom_call.1} parent=1 // pred_check_branch
      %49 = sbr.rel (0) target = $region21
    $region20: #{tpu_custom_call.1} parent=1 // pred_region
      %s51 = ssub.s32 48, 48
      %52 = vsyncadd [#allocation9], %s51
      %s54 = sshll.u32 [#allocation8], 4
      %s55 = int_to_ptr.vmem [resolvable:$true] %s54
      %57 = dma.hbm_to_vmem [thread:$0]  %s4, 48, %s55, [#allocation9]
    $region21: #{tpu_custom_call.1} parent=1 // pred_fallthru
      _
    // Predicated region
    $region22: #{tpu_custom_call.1} parent=1 // pred_check
      _
    $region23: #{tpu_custom_call.1} parent=1 // pred_check_branch
      %59 = sbr.rel (0) target = $region25
    $region24: #{tpu_custom_call.1} parent=1 // pred_region
      %60 = dma.done [#allocation3], 128
    $region25: #{tpu_custom_call.1} parent=1 // pred_fallthru
      _
    // Predicated region
    $region26: #{tpu_custom_call.1} parent=1 // pred_check
      _
    $region27: #{tpu_custom_call.1} parent=1 // pred_check_branch
      %62 = sbr.rel (0) target = $region29
    $region28: #{tpu_custom_call.1} parent=1 // pred_region
      %63 = dma.done [#allocation6], 128
    $region29: #{tpu_custom_call.1} parent=1 // pred_fallthru
      _
    // Predicated region
    $region30: #{tpu_custom_call.1} parent=1 // pred_check
      _
    $region31: #{tpu_custom_call.1} parent=1 // pred_check_branch
      %65 = sbr.rel (0) target = $region33
    $region32: #{tpu_custom_call.1} parent=1 // pred_region
      %66 = dma.done [#allocation6], 1152
    $region33: #{tpu_custom_call.1} parent=1 // pred_fallthru
      _
    // Predicated region
    $region34: #{tpu_custom_call.1} parent=1 // pred_check
      _
    $region35: #{tpu_custom_call.1} parent=1 // pred_check_branch
      %68 = sbr.rel (0) target = $region37
    $region36: #{tpu_custom_call.1} parent=1 // pred_region
      %69 = dma.done [#allocation9], 48
    $region37: #{tpu_custom_call.1} parent=1 // pred_fallthru
      _
    %v71 = vld [vmem:[#allocation2] sm:$0xff]
    %v72 = vld [vmem:[#allocation5] sm:$0xff]
    %74 = vrot.lane.b32.xlu0 %v72, 16
    %v75 = vpop.permute.xlu0 %74
    %vm77 = vcmask 130048
    %v78 = vsel %vm77, %v71, %v75
    %v79 = vpack.c.bf16 %v78, %v78
    %v80 = vld [vmem:[#allocation7] sm:$0xff]
    %v81 = vld [vmem:[#allocation7 + $0x8] sm:$0xf]
    %v82 = vld [vmem:[#allocation7 + $0xc] sm:$0xff]
    %v83 = vld [vmem:[#allocation7 + $0x14] sm:$0xf]
    %v84 = vld [vmem:[#allocation7 + $0x18] sm:$0xff]
    %v85 = vld [vmem:[#allocation7 + $0x20] sm:$0xf]
    %v86 = vld [vmem:[#allocation7 + $0x24] sm:$0xff]
    %v87 = vld [vmem:[#allocation7 + $0x2c] sm:$0xf]
    %v88 = vld [vmem:[#allocation7 + $0x30] sm:$0xff]
    %v89 = vld [vmem:[#allocation7 + $0x38] sm:$0xf]
    %v90 = vld [vmem:[#allocation7 + $0x3c] sm:$0xff]
    %v91 = vld [vmem:[#allocation7 + $0x44] sm:$0xf]
    %v92 = vld [vmem:[#allocation8] sm:$0x7]
    %v94 = vlaneseq
    %v95 = vshrl.u32 %v94, 7
    %v96 = vsub.s32 0, %v95
    %v97 = vrot.slane %v92, %v96
    %v98 = vlaneseq
    %v99 = vshrl.u32 %v98, 7
    %v100 = vsub.s32 1, %v99
    %v101 = vrot.slane %v92, %v100
    %v102 = vlaneseq
    %v103 = vshrl.u32 %v102, 7
    %v104 = vsub.s32 2, %v103
    %v105 = vrot.slane %v92, %v104
    %v121 = vunpack.c.l.b16 %v80
    %v122 = vunpack.c.h.b16 %v80
    %v123 = vunpack.c.l.b16 %v81
    %v124 = vunpack.c.l.b16 %v82
    %v125 = vunpack.c.h.b16 %v82
    %v126 = vunpack.c.l.b16 %v83
    %v127 = vunpack.c.l.b16 %v84
    %v128 = vunpack.c.h.b16 %v84
    %v129 = vunpack.c.l.b16 %v85
    %v130 = vunpack.c.l.b16 %v86
    %v131 = vunpack.c.h.b16 %v86
    %v132 = vunpack.c.l.b16 %v87
    %v133 = vunpack.c.l.b16 %v88
    %v134 = vunpack.c.h.b16 %v88
    %v135 = vunpack.c.l.b16 %v89
    %v136 = vunpack.c.l.b16 %v90
    %v137 = vunpack.c.h.b16 %v90
    %v138 = vunpack.c.l.b16 %v91
    %v139 = vpack.c.b16 %v124, %v121
    %v140 = vpack.c.b16 %v125, %v122
    %v141 = vpack.c.b16 %v126, %v123
    %v142 = vpack.c.b16 %v130, %v127
    %v143 = vpack.c.b16 %v131, %v128
    %v144 = vpack.c.b16 %v132, %v129
    %v145 = vpack.c.b16 %v136, %v133
    %v146 = vpack.c.b16 %v137, %v134
    %v147 = vpack.c.b16 %v138, %v135
    %vm157 = vcmask 392192
    %v159 = vsel %vm157, %v79, 0
    %161 = vmatprep.subr.bf16.mxu0 0
    %162 = vmatpush1.bf16.msra.mxu0 0
    %163 = vmatprep.subr.bf16.mxu0 0
    %164 = vmatpush1.bf16.msra.mxu0 0
    %165 = vmatprep.subr.bf16.mxu0 0
    %166 = vmatpush1.bf16.msra.mxu0 0
    %167 = vmatprep.subr.bf16.mxu0 0
    %168 = vmatpush1.bf16.msra.mxu0 0
    %169 = vmatprep.subr.bf16.mxu0 0
    %170 = vmatpush1.bf16.msra.mxu0 0
    %171 = vmatprep.subr.bf16.mxu0 %v146
    %172 = vmatpush1.bf16.msra.mxu0 %v145
    %173 = vmatprep.subr.bf16.mxu0 %v143
    %174 = vmatpush1.bf16.msra.mxu0 %v142
    %175 = vmatprep.subr.bf16.mxu0 %v140
    %176 = vmatpush1.bf16.msra.mxu0 %v139
    %177 = vmatprep.subr.bf16.mxu0 0
    %178 = vmatpush2.bf16.msra.mxu0 0
    %179 = vmatprep.subr.bf16.mxu0 0
    %180 = vmatpush2.bf16.msra.mxu0 0
    %181 = vmatprep.subr.bf16.mxu0 0
    %182 = vmatpush2.bf16.msra.mxu0 0
    %183 = vmatprep.subr.bf16.mxu0 0
    %184 = vmatpush2.bf16.msra.mxu0 0
    %185 = vmatprep.subr.bf16.mxu0 0
    %186 = vmatpush2.bf16.msra.mxu0 0
    %187 = vmatprep.subr.bf16.mxu0 0
    %188 = vmatpush2.bf16.msra.mxu0 0
    %189 = vmatprep.subr.bf16.mxu0 0
    %190 = vmatpush2.bf16.msra.mxu0 0
    %191 = vmatprep.subr.bf16.mxu0 0
    %192 = vmatpush2.bf16.msra.mxu0 0
    %193 = vmatprep.mubr.bf16.mxu0 0
    %194 = vmatmul.mubr.bf16.gmra.mxu0 %v159
    %v195 = vpop.f32.mrf.mxu0
    %v196 = vadd.f32 %v97, %v195
    %v197 = vpop.f32.mrf.mxu0
    %v198 = vadd.f32 %v101, %v197
    %v199 = vpop.f32.mrf.mxu0
    %v200 = vpop.f32.mrf.mxu0
    %201 = vdwg.mxu0
    %202 = vmatprep.subr.bf16.mxu0 0
    %203 = vmatpush1.bf16.msra.mxu0 0
    %204 = vmatprep.subr.bf16.mxu0 0
    %205 = vmatpush1.bf16.msra.mxu0 0
    %206 = vmatprep.subr.bf16.mxu0 0
    %207 = vmatpush1.bf16.msra.mxu0 0
    %208 = vmatprep.subr.bf16.mxu0 0
    %209 = vmatpush1.bf16.msra.mxu0 0
    %210 = vmatprep.subr.bf16.mxu0 0
    %211 = vmatpush1.bf16.msra.mxu0 0
    %212 = vmatprep.subr.bf16.mxu0 0
    %213 = vmatpush1.bf16.msra.mxu0 %v147
    %214 = vmatprep.subr.bf16.mxu0 0
    %215 = vmatpush1.bf16.msra.mxu0 %v144
    %216 = vmatprep.subr.bf16.mxu0 0
    %217 = vmatpush1.bf16.msra.mxu0 %v141
    %218 = vmatprep.subr.bf16.mxu0 0
    %219 = vmatpush2.bf16.msra.mxu0 0
    %220 = vmatprep.subr.bf16.mxu0 0
    %221 = vmatpush2.bf16.msra.mxu0 0
    %222 = vmatprep.subr.bf16.mxu0 0
    %223 = vmatpush2.bf16.msra.mxu0 0
    %224 = vmatprep.subr.bf16.mxu0 0
    %225 = vmatpush2.bf16.msra.mxu0 0
    %226 = vmatprep.subr.bf16.mxu0 0
    %227 = vmatpush2.bf16.msra.mxu0 0
    %228 = vmatprep.subr.bf16.mxu0 0
    %229 = vmatpush2.bf16.msra.mxu0 0
    %230 = vmatprep.subr.bf16.mxu0 0
    %231 = vmatpush2.bf16.msra.mxu0 0
    %232 = vmatprep.subr.bf16.mxu0 0
    %233 = vmatpush2.bf16.msra.mxu0 0
    %234 = vmatprep.mubr.bf16.mxu0 0
    %235 = vmatmul.mubr.bf16.gmra.mxu0 %v159
    %v236 = vpop.f32.mrf.mxu0
    %v237 = vadd.f32 %v105, %v236
    %v238 = vpop.f32.mrf.mxu0
    %v239 = vpop.f32.mrf.mxu0
    %v240 = vpop.f32.mrf.mxu0
    %241 = vdwg.mxu0
    %v242 = vxor.u32 %v196, 2147483648
    %v243 = vmul.f32 %v242, 1.442695
    %v244 = vpow.pop %v243
    %v245 = vadd.f32 %v244, 1.0
    %v246 = vrcp.pop %v245
    %v247 = vmul.f32 1.0, %v246
    %v248 = vxor.u32 %v198, 2147483648
    %v249 = vmul.f32 %v248, 1.442695
    %v250 = vpow.pop %v249
    %v251 = vadd.f32 %v250, 1.0
    %v252 = vrcp.pop %v251
    %v253 = vmul.f32 1.0, %v252
    %v254 = vmul.f32 %v253, %v72
    %v255 = vpack.c.bf16 %v254, %v254
    %v256 = vld [vmem:[%s3] sm:$0xf]
    %v257 = vld [vmem:[%s3 + $0x4] sm:$0xf]
    %v258 = vld [vmem:[%s3 + $0x8] sm:$0xf]
    %v259 = vld [vmem:[%s3 + $0xc] sm:$0xf]
    %v264 = vunpack.c.l.b16 %v256
    %v265 = vunpack.c.l.b16 %v257
    %v266 = vunpack.c.l.b16 %v258
    %v267 = vunpack.c.l.b16 %v259
    %v268 = vpack.c.b16 %v265, %v264
    %v269 = vpack.c.b16 %v267, %v266
    %vm272 = vcmask 261120
    %v274 = vsel %vm272, %v255, 0
    %276 = vmatprep.subr.bf16.mxu0 0
    %277 = vmatpush1.bf16.msra.mxu0 0
    %278 = vmatprep.subr.bf16.mxu0 0
    %279 = vmatpush1.bf16.msra.mxu0 0
    %280 = vmatprep.subr.bf16.mxu0 0
    %281 = vmatpush1.bf16.msra.mxu0 0
    %282 = vmatprep.subr.bf16.mxu0 0
    %283 = vmatpush1.bf16.msra.mxu0 0
    %284 = vmatprep.subr.bf16.mxu0 0
    %285 = vmatpush1.bf16.msra.mxu0 0
    %286 = vmatprep.subr.bf16.mxu0 0
    %287 = vmatpush1.bf16.msra.mxu0 0
    %288 = vmatprep.subr.bf16.mxu0 0
    %289 = vmatpush1.bf16.msra.mxu0 %v269
    %290 = vmatprep.subr.bf16.mxu0 0
    %291 = vmatpush1.bf16.msra.mxu0 %v268
    %292 = vmatprep.subr.bf16.mxu0 0
    %293 = vmatpush2.bf16.msra.mxu0 0
    %294 = vmatprep.subr.bf16.mxu0 0
    %295 = vmatpush2.bf16.msra.mxu0 0
    %296 = vmatprep.subr.bf16.mxu0 0
    %297 = vmatpush2.bf16.msra.mxu0 0
    %298 = vmatprep.subr.bf16.mxu0 0
    %299 = vmatpush2.bf16.msra.mxu0 0
    %300 = vmatprep.subr.bf16.mxu0 0
    %301 = vmatpush2.bf16.msra.mxu0 0
    %302 = vmatprep.subr.bf16.mxu0 0
    %303 = vmatpush2.bf16.msra.mxu0 0
    %304 = vmatprep.subr.bf16.mxu0 0
    %305 = vmatpush2.bf16.msra.mxu0 0
    %306 = vmatprep.subr.bf16.mxu0 0
    %307 = vmatpush2.bf16.msra.mxu0 0
    %308 = vmatprep.mubr.bf16.mxu0 0
    %309 = vmatmul.mubr.bf16.gmra.mxu0 %v274
    %v310 = vpop.f32.mrf.mxu0
    %v311 = vadd.f32 %v237, %v310
    %v312 = vpop.f32.mrf.mxu0
    %v313 = vpop.f32.mrf.mxu0
    %v314 = vpop.f32.mrf.mxu0
    %315 = vdwg.mxu0
    %v316 = vtanh.pop %v311
    %v317 = vsub.f32 %v316, %v72
    %v318 = vmul.f32 %v247, %v317
    %v319 = vadd.f32 %v72, %v318
    %320 = vst.msk [vmem:[#allocation10] sm:$0xff] %vm272, %v319
    // Predicated region
    $region38: #{tpu_custom_call.1} parent=1 // pred_check
      _
    $region39: #{tpu_custom_call.1} parent=1 // pred_check_branch
      %322 = sbr.rel (0) target = $region41
    $region40: #{tpu_custom_call.1} parent=1 // pred_region
      %s324 = ssub.s32 128, 128
      %325 = vsyncadd [#allocation4], %s324
      %s327 = sshll.u32 [#allocation10], 4
      %s328 = int_to_ptr.vmem [resolvable:$true] %s327
      %330 = dma.vmem_to_hbm [thread:$0]  %s328, 128, %s5, [#allocation4]
    $region41: #{tpu_custom_call.1} parent=1 // pred_fallthru
      _
    // Predicated region
    $region42: #{tpu_custom_call.1} parent=1 // pred_check
      _
    $region43: #{tpu_custom_call.1} parent=1 // pred_check_branch
      %332 = sbr.rel (0) target = $region45
    $region44: #{tpu_custom_call.1} parent=1 // pred_region
      %333 = dma.done [#allocation4], 128
    $region45: #{tpu_custom_call.1} parent=1 // pred_fallthru
      _
    %334 = vsyncpa [#allocation3], 1
    %335 = vsyncpa [#allocation6], 1
    %336 = vsyncpa [#allocation9], 1
    %337 = vsyncpa [#allocation4], 1

</llo_original>
